<compile_context>
chip_gen: v7x
topology: tpu7x:2x2x1
jax: 0.10.0
libtpu: 0.0.40
codegen_flags: <defaults>
</compile_context>

<pallas_src>
import jax
import jax.numpy as jnp
from jax.experimental import pallas as pl
from jax.experimental.pallas import tpu as pltpu

OUT_PAD = 8  # sublane-padded output feature count (>= 3, multiple of 8)


def make_pinn_kernel(n_layers):
    """Kernel over transposed activations: h is (features, tile_m), batch on lanes."""

    def kernel(*refs):
        x_ref = refs[0]
        o_ref = refs[-1]
        param_refs = refs[1:-1]  # [W0^T, b0^T, W1^T, b1^T, ...]
        h = x_ref[...]                                     # (Fin, tile_m)
        for l in range(n_layers):
            w = param_refs[2 * l][...]                     # (out, in)
            b = param_refs[2 * l + 1][...]                 # (out, 1) -> lane broadcast
            h = jnp.dot(w, h, preferred_element_type=jnp.float32) + b
            if l < n_layers - 1:
                h = jnp.tanh(h)                            # EUP
        o_ref[...] = h.astype(o_ref.dtype)                 # (OUT_PAD, tile_m), dense vst

    return kernel


def pinn_forward(x, lb, ub, params, *, tile_m=2048):
    """x: [N, 2] float32. params: list of (W [in,out], b [1,out]). Returns [N, Fout]."""
    N, Fin = x.shape
    n_layers = len(params)
    Fout = params[-1][0].shape[1]

    x = x.astype(jnp.float32)
    lb = lb.reshape(-1).astype(jnp.float32)
    ub = ub.reshape(-1).astype(jnp.float32)

    # ---- Host-side parameter folding -------------------------------------------
    # 2*(x-lb)/(ub-lb) - 1 == x*scale - shift, with
    #   scale = 2/(ub-lb), shift = 2*lb/(ub-lb) + 1
    # so (x*scale - shift) @ W0 + b0 == x @ (diag(scale) @ W0) + (b0 - shift @ W0).
    # NOTE: divides by (ub - lb); ub == lb is ill-posed (same hazard as the torch code).
    scale = 2.0 / (ub - lb)
    shift = 2.0 * lb / (ub - lb) + 1.0
    W0, b0 = params[0]
    W0f = scale[:, None] * W0
    b0f = b0 - shift[None, :] @ W0

    Ws = [W0f] + [W for (W, _) in params[1:]]
    bs = [b0f] + [b for (_, b) in params[1:]]

    # Transposed layout: layer l computes W^T @ h + b^T, activations are (feat, batch).
    WT = [jnp.asarray(W, jnp.float32).T for W in Ws]              # (out, in)
    bT = [jnp.asarray(b, jnp.float32).reshape(-1, 1) for b in bs]  # (out, 1)

    # Zero-pad the output layer to OUT_PAD sublanes -> small, dense writeback.
    WT[-1] = jnp.zeros((OUT_PAD, WT[-1].shape[1]), jnp.float32).at[:Fout, :].set(WT[-1])
    bT[-1] = jnp.zeros((OUT_PAD, 1), jnp.float32).at[:Fout, :].set(bT[-1])

    flat_params = []
    for w, b in zip(WT, bT):
        flat_params += [w, b]

    # ---- Batch tiling ------------------------------------------------------------
    tile_m = max(128, (int(tile_m) // 128) * 128)
    # Keep at least ~4 grid steps so v7x's two TensorCores both get work.
    per_step = ((pl.cdiv(N, 4) + 127) // 128) * 128
    tile_m = min(tile_m, max(128, per_step))
    n_tiles = pl.cdiv(N, tile_m)
    N_pad = n_tiles * tile_m

    if N_pad != N:
        x = jnp.pad(x, ((0, N_pad - N), (0, 0)))
    x_t = x.T  # (Fin, N_pad): batch on the lane dimension

    x_spec = pl.BlockSpec((Fin, tile_m), lambda i: (0, i))
    out_spec = pl.BlockSpec((OUT_PAD, tile_m), lambda i: (0, i))

    def full_spec(arr):
        # grid-invariant index_map -> each parameter block is fetched once
        return pl.BlockSpec(arr.shape, lambda i: (0,) * arr.ndim)

    in_specs = [x_spec] + [full_spec(p) for p in flat_params]

    out_t = pl.pallas_call(
        make_pinn_kernel(n_layers),
        out_shape=jax.ShapeDtypeStruct((OUT_PAD, N_pad), jnp.float32),
        grid=(n_tiles,),
        in_specs=in_specs,
        out_specs=out_spec,
        compiler_params=pltpu.CompilerParams(
            dimension_semantics=("parallel",)),
    )(x_t, *flat_params)

    return out_t[:Fout, :N].T  # back to (N, Fout)


def init_params(key, layers):
    """Deterministic init matching the nn.Linear shapes in the torch module."""
    params = []
    for i in range(len(layers) - 1):
        key, kw, kb = jax.random.split(key, 3)
        fan_in, fan_out = layers[i], layers[i + 1]
        bound = 1.0 / jnp.sqrt(fan_in)
        W = jax.random.uniform(kw, (fan_in, fan_out), jnp.float32, -bound, bound)
        b = jax.random.uniform(kb, (1, fan_out), jnp.float32, -bound, bound)
        params.append((W, b))
    return params


def pinn_forward_ref(x, lb, ub, params):
    """Pure-JAX reference of the same forward pass (un-folded normalization)."""
    h = 2.0 * (x - lb.reshape(1, -1)) / (ub.reshape(1, -1) - lb.reshape(1, -1)) - 1.0
    for (W, b) in params[:-1]:
        h = jnp.tanh(h @ W + b)
    W, b = params[-1]
    return h @ W + b


if __name__ == "__main__":
    # layers = [2, 32, 32, 32, 3]: input (x, y), 3 hidden tanh layers of 32, output (u, v, p)
    layers = [2, 32, 32, 32, 3]
    N = 1000  # ragged on purpose: exercises the pad-to-tile path; 4 parallel grid steps

    key = jax.random.PRNGKey(0)
    key, kx = jax.random.split(key)

    lb = jnp.array([0.0, 0.0], dtype=jnp.float32)   # domain lower bound
    ub = jnp.array([1.0, 1.0], dtype=jnp.float32)   # domain upper bound

    params = init_params(key, layers)

    # collocation points (x, y) inside the domain
    xy = jax.random.uniform(kx, (N, 2), jnp.float32, 0.0, 1.0)

    out = pinn_forward(xy, lb, ub, params)
    out = jax.block_until_ready(out)

    ref = pinn_forward_ref(xy, lb, ub, params)
    assert out.shape == (N, layers[-1])
    assert jnp.allclose(out, ref, atol=2e-5, rtol=2e-5), "mismatch vs pure-JAX reference"

    # TODO(synk): net_f / net_uvp (PDE residuals) require nested autograd through
    # pallas_call; expose via custom_vjp or a fused forward+derivative kernel.
    print("KERNEL_OK")
</pallas_src>

<mosaic_0001>
module attributes {stable_mosaic.version = 11 : i64} {
  func.func @kernel(%arg0: i32, %arg1: memref<2x256xf32, #tpu.memory_space<vmem>>, %arg2: memref<32x2xf32, #tpu.memory_space<vmem>>, %arg3: memref<32x1xf32, #tpu.memory_space<vmem>>, %arg4: memref<32x32xf32, #tpu.memory_space<vmem>>, %arg5: memref<32x1xf32, #tpu.memory_space<vmem>>, %arg6: memref<32x32xf32, #tpu.memory_space<vmem>>, %arg7: memref<32x1xf32, #tpu.memory_space<vmem>>, %arg8: memref<8x32xf32, #tpu.memory_space<vmem>>, %arg9: memref<8x1xf32, #tpu.memory_space<vmem>>, %arg10: memref<8x256xf32, #tpu.memory_space<vmem>>) attributes {dimension_semantics = [#tpu.dimension_semantics<parallel>], iteration_bounds = array<i64: 4>, scalar_prefetch = 0 : i64, scratch_operands = 0 : i64, tpu.core_type = #tpu.core_type<tc>, window_params = [{transform_indices = @transform_0, window_bounds = array<i64: 2, 256>}, {pipeline_mode = #tpu.pipeline_mode<synchronous>, transform_indices = @transform_1, window_bounds = array<i64: 32, 2>}, {pipeline_mode = #tpu.pipeline_mode<synchronous>, transform_indices = @transform_2, window_bounds = array<i64: 32, 1>}, {pipeline_mode = #tpu.pipeline_mode<synchronous>, transform_indices = @transform_3, window_bounds = array<i64: 32, 32>}, {pipeline_mode = #tpu.pipeline_mode<synchronous>, transform_indices = @transform_4, window_bounds = array<i64: 32, 1>}, {pipeline_mode = #tpu.pipeline_mode<synchronous>, transform_indices = @transform_5, window_bounds = array<i64: 32, 32>}, {pipeline_mode = #tpu.pipeline_mode<synchronous>, transform_indices = @transform_6, window_bounds = array<i64: 32, 1>}, {pipeline_mode = #tpu.pipeline_mode<synchronous>, transform_indices = @transform_7, window_bounds = array<i64: 8, 32>}, {pipeline_mode = #tpu.pipeline_mode<synchronous>, transform_indices = @transform_8, window_bounds = array<i64: 8, 1>}, {transform_indices = @transform_9, window_bounds = array<i64: 8, 256>}]} {
    %c0 = arith.constant 0 : index
    %c0_0 = arith.constant 0 : index
    %0 = vector.load %arg1[%c0, %c0_0] : memref<2x256xf32, #tpu.memory_space<vmem>>, vector<2x256xf32>
    %c0_1 = arith.constant 0 : index
    %c0_2 = arith.constant 0 : index
    %1 = vector.load %arg2[%c0_1, %c0_2] : memref<32x2xf32, #tpu.memory_space<vmem>>, vector<32x2xf32>
    %c0_3 = arith.constant 0 : index
    %c0_4 = arith.constant 0 : index
    %2 = vector.load %arg3[%c0_3, %c0_4] : memref<32x1xf32, #tpu.memory_space<vmem>>, vector<32x1xf32>
    %cst = arith.constant dense<0.000000e+00> : vector<32x256xf32>
    %3 = tpu.matmul %1, %0, %cst {dimension_numbers = #tpu.dot_dimension_numbers<[1], [0], [0], [1], [0, 0, 1, 1], [], []>} : vector<32x2xf32>, vector<2x256xf32>, vector<32x256xf32> -> vector<32x256xf32>
    %4 = vector.broadcast %2 : vector<32x1xf32> to vector<32x256xf32>
    %5 = arith.addf %3, %4 : vector<32x256xf32>
    %6 = math.tanh %5 : vector<32x256xf32>
    %c0_5 = arith.constant 0 : index
    %c0_6 = arith.constant 0 : index
    %7 = vector.load %arg4[%c0_5, %c0_6] : memref<32x32xf32, #tpu.memory_space<vmem>>, vector<32x32xf32>
    %c0_7 = arith.constant 0 : index
    %c0_8 = arith.constant 0 : index
    %8 = vector.load %arg5[%c0_7, %c0_8] : memref<32x1xf32, #tpu.memory_space<vmem>>, vector<32x1xf32>
    %cst_9 = arith.constant dense<0.000000e+00> : vector<32x256xf32>
    %9 = tpu.matmul %7, %6, %cst_9 {dimension_numbers = #tpu.dot_dimension_numbers<[1], [0], [0], [1], [0, 0, 1, 1], [], []>} : vector<32x32xf32>, vector<32x256xf32>, vector<32x256xf32> -> vector<32x256xf32>
    %10 = vector.broadcast %8 : vector<32x1xf32> to vector<32x256xf32>
    %11 = arith.addf %9, %10 : vector<32x256xf32>
    %12 = math.tanh %11 : vector<32x256xf32>
    %c0_10 = arith.constant 0 : index
    %c0_11 = arith.constant 0 : index
    %13 = vector.load %arg6[%c0_10, %c0_11] : memref<32x32xf32, #tpu.memory_space<vmem>>, vector<32x32xf32>
    %c0_12 = arith.constant 0 : index
    %c0_13 = arith.constant 0 : index
    %14 = vector.load %arg7[%c0_12, %c0_13] : memref<32x1xf32, #tpu.memory_space<vmem>>, vector<32x1xf32>
    %cst_14 = arith.constant dense<0.000000e+00> : vector<32x256xf32>
    %15 = tpu.matmul %13, %12, %cst_14 {dimension_numbers = #tpu.dot_dimension_numbers<[1], [0], [0], [1], [0, 0, 1, 1], [], []>} : vector<32x32xf32>, vector<32x256xf32>, vector<32x256xf32> -> vector<32x256xf32>
    %16 = vector.broadcast %14 : vector<32x1xf32> to vector<32x256xf32>
    %17 = arith.addf %15, %16 : vector<32x256xf32>
    %18 = math.tanh %17 : vector<32x256xf32>
    %c0_15 = arith.constant 0 : index
    %c0_16 = arith.constant 0 : index
    %19 = vector.load %arg8[%c0_15, %c0_16] : memref<8x32xf32, #tpu.memory_space<vmem>>, vector<8x32xf32>
    %c0_17 = arith.constant 0 : index
    %c0_18 = arith.constant 0 : index
    %20 = vector.load %arg9[%c0_17, %c0_18] : memref<8x1xf32, #tpu.memory_space<vmem>>, vector<8x1xf32>
    %cst_19 = arith.constant dense<0.000000e+00> : vector<8x256xf32>
    %21 = tpu.matmul %19, %18, %cst_19 {dimension_numbers = #tpu.dot_dimension_numbers<[1], [0], [0], [1], [0, 0, 1, 1], [], []>} : vector<8x32xf32>, vector<32x256xf32>, vector<8x256xf32> -> vector<8x256xf32>
    %22 = vector.broadcast %20 : vector<8x1xf32> to vector<8x256xf32>
    %23 = arith.addf %21, %22 : vector<8x256xf32>
    %c0_20 = arith.constant 0 : index
    %c0_21 = arith.constant 0 : index
    %24 = vector.load %arg10[%c0_20, %c0_21] : memref<8x256xf32, #tpu.memory_space<vmem>>, vector<8x256xf32>
    tpu.vector_store %arg10[%c0_20, %c0_21], %23 {strides = array<i32>} : memref<8x256xf32, #tpu.memory_space<vmem>>, vector<8x256xf32>,
    return
  }
  func.func @transform_0(%arg0: i32) -> (i32, i32) {
    %c0_i32 = arith.constant 0 : i32
    %c0_i32_0 = arith.constant 0 : i32
    return %c0_i32, %arg0 : i32, i32
  }
  func.func @transform_1(%arg0: i32) -> (i32, i32) {
    %c0_i32 = arith.constant 0 : i32
    %c0_i32_0 = arith.constant 0 : i32
    %c0_i32_1 = arith.constant 0 : i32
    return %c0_i32, %c0_i32_0 : i32, i32
  }
  func.func @transform_2(%arg0: i32) -> (i32, i32) {
    %c0_i32 = arith.constant 0 : i32
    %c0_i32_0 = arith.constant 0 : i32
    %c0_i32_1 = arith.constant 0 : i32
    return %c0_i32, %c0_i32_0 : i32, i32
  }
  func.func @transform_3(%arg0: i32) -> (i32, i32) {
    %c0_i32 = arith.constant 0 : i32
    %c0_i32_0 = arith.constant 0 : i32
    %c0_i32_1 = arith.constant 0 : i32
    return %c0_i32, %c0_i32_0 : i32, i32
  }
  func.func @transform_4(%arg0: i32) -> (i32, i32) {
    %c0_i32 = arith.constant 0 : i32
    %c0_i32_0 = arith.constant 0 : i32
    %c0_i32_1 = arith.constant 0 : i32
    return %c0_i32, %c0_i32_0 : i32, i32
  }
  func.func @transform_5(%arg0: i32) -> (i32, i32) {
    %c0_i32 = arith.constant 0 : i32
    %c0_i32_0 = arith.constant 0 : i32
    %c0_i32_1 = arith.constant 0 : i32
    return %c0_i32, %c0_i32_0 : i32, i32
  }
  func.func @transform_6(%arg0: i32) -> (i32, i32) {
    %c0_i32 = arith.constant 0 : i32
    %c0_i32_0 = arith.constant 0 : i32
    %c0_i32_1 = arith.constant 0 : i32
    return %c0_i32, %c0_i32_0 : i32, i32
  }
  func.func @transform_7(%arg0: i32) -> (i32, i32) {
    %c0_i32 = arith.constant 0 : i32
    %c0_i32_0 = arith.constant 0 : i32
    %c0_i32_1 = arith.constant 0 : i32
    return %c0_i32, %c0_i32_0 : i32, i32
  }
  func.func @transform_8(%arg0: i32) -> (i32, i32) {
    %c0_i32 = arith.constant 0 : i32
    %c0_i32_0 = arith.constant 0 : i32
    %c0_i32_1 = arith.constant 0 : i32
    return %c0_i32, %c0_i32_0 : i32, i32
  }
  func.func @transform_9(%arg0: i32) -> (i32, i32) {
    %c0_i32 = arith.constant 0 : i32
    %c0_i32_0 = arith.constant 0 : i32
    return %c0_i32, %arg0 : i32, i32
  }
}

</mosaic_0001>

<llo_original>
// kernel: tpu_custom_call.1
$region0: #{tpu_custom_call.1}
  #allocation0 [shape = 'u32[]', space=smem, size = 0x4, offset = 0x4, fixed_abs, tag = 'smem constant byte address 0x4 - core index']
  #allocation1 [shape = 'u32[144,128]{1,0:T(1,128)}', space=vmem, size = 0x12000, scoped, tag = 'internal scratch']
  %s0 = inlined_call_operand.vmem [shape: f32[2,1024], index: 0, kind: input, shape index: {}]
  %s1 = inlined_call_operand.vmem [shape: f32[32,2], index: 1, kind: input, shape index: {}]
  %s2 = inlined_call_operand.vmem [shape: f32[32,1], index: 2, kind: input, shape index: {}]
  %s3 = inlined_call_operand.vmem [shape: f32[32,32], index: 3, kind: input, shape index: {}]
  %s4 = inlined_call_operand.vmem [shape: f32[32,1], index: 4, kind: input, shape index: {}]
  %s5 = inlined_call_operand.vmem [shape: f32[32,32], index: 5, kind: input, shape index: {}]
  %s6 = inlined_call_operand.vmem [shape: f32[32,1], index: 6, kind: input, shape index: {}]
  %s7 = inlined_call_operand.vmem [shape: f32[8,32], index: 7, kind: input, shape index: {}]
  %s8 = inlined_call_operand.vmem [shape: f32[8,1], index: 8, kind: input, shape index: {}]
  %s9 = inlined_call_operand.hbm [shape: f32[8,1024], index: 9, kind: output, shape index: {}]
  %s10 = sld [smem:[#allocation0]]
  $region69: #{tpu_custom_call.1} parent=0
    _
  %s12 = ssub.s32 1, %s10
  %s13 = scalar_select 0, %s12, %s10
  $region1: #{tpu_custom_call.1} parent=0
    #allocation2 [shape = 'u8[16384]{0}', space=vmem, size = 0x4000, scoped, tag = 'output window, operand 0']
    #allocation3 [shape = 's32[2]{0}', space=sflag, size = 0x8, scoped, tag = 'scoped memory for tpu_custom_call.1']
    %14 = vsyncpa [#allocation3], 0
    %s15 = scalar_lea.sflag [#allocation3], 1
    %16 = vsyncpa %s15, 0
    loop: start=0, step=1, limit=6
    $region2: #{tpu_custom_call.1} parent=1 // loop_pre_header
      _
    $region3: #{tpu_custom_call.1} parent=1 // loop_header
      %s18 = sphi 0, %s22
      %p19 = scmp.ge.s32.totalorder %s18, 6
      %s28 = sphi 0, %s30
      %s31 = sphi 0, %s28
      %s32 = sphi 0, %s31
      %s48 = sphi 0, %s32
      %s52 = sphi 0, %s52
      %s54 = sphi 0, %s52
      %s55 = sphi 0, %s54
      %s69 = sphi 0, %s55
      %s73 = sphi 0, %s73
      %s75 = sphi 0, %s73
      %s76 = sphi 0, %s75
      %s90 = sphi 0, %s76
      %s94 = sphi 0, %s94
      %s96 = sphi 0, %s94
      %s97 = sphi 0, %s96
      %s111 = sphi 0, %s97
      %s115 = sphi 0, %s115
      %s117 = sphi 0, %s115
      %s118 = sphi 0, %s117
      %s132 = sphi 0, %s118
      %s136 = sphi 0, %s136
      %s138 = sphi 0, %s136
      %s139 = sphi 0, %s138
      %s153 = sphi 0, %s139
      %s157 = sphi 0, %s157
      %s159 = sphi 0, %s157
      %s160 = sphi 0, %s159
      %s174 = sphi 0, %s160
      %s178 = sphi 0, %s178
      %s180 = sphi 0, %s178
      %s181 = sphi 0, %s180
      %s195 = sphi 0, %s181
      %s199 = sphi 0, %s199
      %s201 = sphi 0, %s199
      %s202 = sphi 0, %s201
      %s216 = sphi 0, %s202
      %s222 = sphi 0, %s224
      %s225 = sphi 0, %s222
      %s226 = sphi 0, %s225
      %s242 = sphi 0, %s226
    $region4: #{tpu_custom_call.1} parent=1 // loop_header_branch
      %21 = sbr.rel (%p19) target = $region8
    $region5: #{tpu_custom_call.1} parent=1 // loop_body
      %s23 = ssub.s32 %s18, 1
      %s24 = ssub.s32 %s18, 2
      %s25 = sadd.s32 %s18, 1
      %s26 = ssub.s32 %s18, %s25
      %p27 = scmp.eq.s32.totalorder %s26, 0
      %s29 = sadd.s32 %s28, 1
      %s30 = scalar_select %p27, %s28, %s29
      %p33 = pneg %p27
      %p34 = scmp.eq.s32.totalorder %s18, 3
      %p35 = por %p33, %p34
      %p36 = scmp.ne.s32.totalorder %s28, %s31
      %p37 = scmp.eq.s32.totalorder %s18, 0
      %p38 = por %p36, %p37
      %p39 = scmp.ne.s32.totalorder %s28, %s31
      %p40 = scmp.eq.s32.totalorder %s23, 3
      %p41 = por %p39, %p40
      %p42 = scmp.ne.s32.totalorder %s31, %s32
      %p43 = scmp.eq.s32.totalorder %s23, 0
      %p44 = por %p42, %p43
      %p45 = scmp.ne.s32.totalorder %s31, %s32
      %p46 = scmp.eq.s32.totalorder %s24, 3
      %p47 = por %p45, %p46
      %p49 = scmp.ne.s32.totalorder %s32, %s48
      %p50 = scmp.eq.s32.totalorder %s24, 0
      %p51 = por %p49, %p50
      %s53 = sadd.s32 %s52, 1
      %p56 = scmp.eq.s32.totalorder %s18, 3
      %p57 = scmp.ne.s32.totalorder %s52, %s54
      %p58 = scmp.eq.s32.totalorder %s18, 0
      %p59 = por %p57, %p58
      %p60 = scmp.ne.s32.totalorder %s52, %s54
      %p61 = scmp.eq.s32.totalorder %s23, 3
      %p62 = por %p60, %p61
      %p63 = scmp.ne.s32.totalorder %s54, %s55
      %p64 = scmp.eq.s32.totalorder %s23, 0
      %p65 = por %p63, %p64
      %p66 = scmp.ne.s32.totalorder %s54, %s55
      %p67 = scmp.eq.s32.totalorder %s24, 3
      %p68 = por %p66, %p67
      %p70 = scmp.ne.s32.totalorder %s55, %s69
      %p71 = scmp.eq.s32.totalorder %s24, 0
      %p72 = por %p70, %p71
      %s74 = sadd.s32 %s73, 1
      %p77 = scmp.eq.s32.totalorder %s18, 3
      %p78 = scmp.ne.s32.totalorder %s73, %s75
      %p79 = scmp.eq.s32.totalorder %s18, 0
      %p80 = por %p78, %p79
      %p81 = scmp.ne.s32.totalorder %s73, %s75
      %p82 = scmp.eq.s32.totalorder %s23, 3
      %p83 = por %p81, %p82
      %p84 = scmp.ne.s32.totalorder %s75, %s76
      %p85 = scmp.eq.s32.totalorder %s23, 0
      %p86 = por %p84, %p85
      %p87 = scmp.ne.s32.totalorder %s75, %s76
      %p88 = scmp.eq.s32.totalorder %s24, 3
      %p89 = por %p87, %p88
      %p91 = scmp.ne.s32.totalorder %s76, %s90
      %p92 = scmp.eq.s32.totalorder %s24, 0
      %p93 = por %p91, %p92
      %s95 = sadd.s32 %s94, 1
      %p98 = scmp.eq.s32.totalorder %s18, 3
      %p99 = scmp.ne.s32.totalorder %s94, %s96
      %p100 = scmp.eq.s32.totalorder %s18, 0
      %p101 = por %p99, %p100
      %p102 = scmp.ne.s32.totalorder %s94, %s96
      %p103 = scmp.eq.s32.totalorder %s23, 3
      %p104 = por %p102, %p103
      %p105 = scmp.ne.s32.totalorder %s96, %s97
      %p106 = scmp.eq.s32.totalorder %s23, 0
      %p107 = por %p105, %p106
      %p108 = scmp.ne.s32.totalorder %s96, %s97
      %p109 = scmp.eq.s32.totalorder %s24, 3
      %p110 = por %p108, %p109
      %p112 = scmp.ne.s32.totalorder %s97, %s111
      %p113 = scmp.eq.s32.totalorder %s24, 0
      %p114 = por %p112, %p113
      %s116 = sadd.s32 %s115, 1
      %p119 = scmp.eq.s32.totalorder %s18, 3
      %p120 = scmp.ne.s32.totalorder %s115, %s117
      %p121 = scmp.eq.s32.totalorder %s18, 0
      %p122 = por %p120, %p121
      %p123 = scmp.ne.s32.totalorder %s115, %s117
      %p124 = scmp.eq.s32.totalorder %s23, 3
      %p125 = por %p123, %p124
      %p126 = scmp.ne.s32.totalorder %s117, %s118
      %p127 = scmp.eq.s32.totalorder %s23, 0
      %p128 = por %p126, %p127
      %p129 = scmp.ne.s32.totalorder %s117, %s118
      %p130 = scmp.eq.s32.totalorder %s24, 3
      %p131 = por %p129, %p130
      %p133 = scmp.ne.s32.totalorder %s118, %s132
      %p134 = scmp.eq.s32.totalorder %s24, 0
      %p135 = por %p133, %p134
      %s137 = sadd.s32 %s136, 1
      %p140 = scmp.eq.s32.totalorder %s18, 3
      %p141 = scmp.ne.s32.totalorder %s136, %s138
      %p142 = scmp.eq.s32.totalorder %s18, 0
      %p143 = por %p141, %p142
      %p144 = scmp.ne.s32.totalorder %s136, %s138
      %p145 = scmp.eq.s32.totalorder %s23, 3
      %p146 = por %p144, %p145
      %p147 = scmp.ne.s32.totalorder %s138, %s139
      %p148 = scmp.eq.s32.totalorder %s23, 0
      %p149 = por %p147, %p148
      %p150 = scmp.ne.s32.totalorder %s138, %s139
      %p151 = scmp.eq.s32.totalorder %s24, 3
      %p152 = por %p150, %p151
      %p154 = scmp.ne.s32.totalorder %s139, %s153
      %p155 = scmp.eq.s32.totalorder %s24, 0
      %p156 = por %p154, %p155
      %s158 = sadd.s32 %s157, 1
      %p161 = scmp.eq.s32.totalorder %s18, 3
      %p162 = scmp.ne.s32.totalorder %s157, %s159
      %p163 = scmp.eq.s32.totalorder %s18, 0
      %p164 = por %p162, %p163
      %p165 = scmp.ne.s32.totalorder %s157, %s159
      %p166 = scmp.eq.s32.totalorder %s23, 3
      %p167 = por %p165, %p166
      %p168 = scmp.ne.s32.totalorder %s159, %s160
      %p169 = scmp.eq.s32.totalorder %s23, 0
      %p170 = por %p168, %p169
      %p171 = scmp.ne.s32.totalorder %s159, %s160
      %p172 = scmp.eq.s32.totalorder %s24, 3
      %p173 = por %p171, %p172
      %p175 = scmp.ne.s32.totalorder %s160, %s174
      %p176 = scmp.eq.s32.totalorder %s24, 0
      %p177 = por %p175, %p176
      %s179 = sadd.s32 %s178, 1
      %p182 = scmp.eq.s32.totalorder %s18, 3
      %p183 = scmp.ne.s32.totalorder %s178, %s180
      %p184 = scmp.eq.s32.totalorder %s18, 0
      %p185 = por %p183, %p184
      %p186 = scmp.ne.s32.totalorder %s178, %s180
      %p187 = scmp.eq.s32.totalorder %s23, 3
      %p188 = por %p186, %p187
      %p189 = scmp.ne.s32.totalorder %s180, %s181
      %p190 = scmp.eq.s32.totalorder %s23, 0
      %p191 = por %p189, %p190
      %p192 = scmp.ne.s32.totalorder %s180, %s181
      %p193 = scmp.eq.s32.totalorder %s24, 3
      %p194 = por %p192, %p193
      %p196 = scmp.ne.s32.totalorder %s181, %s195
      %p197 = scmp.eq.s32.totalorder %s24, 0
      %p198 = por %p196, %p197
      %s200 = sadd.s32 %s199, 1
      %p203 = scmp.eq.s32.totalorder %s18, 3
      %p204 = scmp.ne.s32.totalorder %s199, %s201
      %p205 = scmp.eq.s32.totalorder %s18, 0
      %p206 = por %p204, %p205
      %p207 = scmp.ne.s32.totalorder %s199, %s201
      %p208 = scmp.eq.s32.totalorder %s23, 3
      %p209 = por %p207, %p208
      %p210 = scmp.ne.s32.totalorder %s201, %s202
      %p211 = scmp.eq.s32.totalorder %s23, 0
      %p212 = por %p210, %p211
      %p213 = scmp.ne.s32.totalorder %s201, %s202
      %p214 = scmp.eq.s32.totalorder %s24, 3
      %p215 = por %p213, %p214
      %p217 = scmp.ne.s32.totalorder %s202, %s216
      %p218 = scmp.eq.s32.totalorder %s24, 0
      %p219 = por %p217, %p218
      %s220 = ssub.s32 %s18, %s25
      %p221 = scmp.eq.s32.totalorder %s220, 0
      %s223 = sadd.s32 %s222, 1
      %s224 = scalar_select %p221, %s222, %s223
      %p227 = pneg %p221
      %p228 = scmp.eq.s32.totalorder %s18, 3
      %p229 = por %p227, %p228
      %p230 = scmp.ne.s32.totalorder %s222, %s225
      %p231 = scmp.eq.s32.totalorder %s18, 0
      %p232 = por %p230, %p231
      %p233 = scmp.ne.s32.totalorder %s222, %s225
      %p234 = scmp.eq.s32.totalorder %s23, 3
      %p235 = por %p233, %p234
      %p236 = scmp.ne.s32.totalorder %s225, %s226
      %p237 = scmp.eq.s32.totalorder %s23, 0
      %p238 = por %p236, %p237
      %p239 = scmp.ne.s32.totalorder %s225, %s226
      %p240 = scmp.eq.s32.totalorder %s24, 3
      %p241 = por %p239, %p240
      %p243 = scmp.ne.s32.totalorder %s226, %s242
      %p244 = scmp.eq.s32.totalorder %s24, 0
      %p245 = por %p243, %p244
      %p246 = scmp.le.s32.totalorder 1, %s18
      %p247 = scmp.lt.s32.totalorder %s18, 5
      %p248 = pnand %p246, %p247
      %p249 = pneg %p248
      // Predicated region
      $region9: #{tpu_custom_call.1} parent=5 // pred_check
        _
      $region10: #{tpu_custom_call.1} parent=5 // pred_check_branch
        %251 = sbr.rel (%p248) target = $region12
      $region11: #{tpu_custom_call.1} parent=5 // pred_region
        %s252 = ssub.s32 %s18, 1
        // Predicated region
        $region13: #{tpu_custom_call.1} parent=11 // pred_check
          %p253 = pneg %p65
        $region14: #{tpu_custom_call.1} parent=11 // pred_check_branch
          %255 = sbr.rel (%p253) target = $region16
        $region15: #{tpu_custom_call.1} parent=11 // pred_region
          _
        $region16: #{tpu_custom_call.1} parent=11 // pred_fallthru
          _
        // Predicated region
        $region17: #{tpu_custom_call.1} parent=11 // pred_check
          %p256 = pneg %p86
        $region18: #{tpu_custom_call.1} parent=11 // pred_check_branch
          %258 = sbr.rel (%p256) target = $region20
        $region19: #{tpu_custom_call.1} parent=11 // pred_region
          _
        $region20: #{tpu_custom_call.1} parent=11 // pred_fallthru
          _
        // Predicated region
        $region21: #{tpu_custom_call.1} parent=11 // pred_check
          %p259 = pneg %p107
        $region22: #{tpu_custom_call.1} parent=11 // pred_check_branch
          %261 = sbr.rel (%p259) target = $region24
        $region23: #{tpu_custom_call.1} parent=11 // pred_region
          _
        $region24: #{tpu_custom_call.1} parent=11 // pred_fallthru
          _
        // Predicated region
        $region25: #{tpu_custom_call.1} parent=11 // pred_check
          %p262 = pneg %p128
        $region26: #{tpu_custom_call.1} parent=11 // pred_check_branch
          %264 = sbr.rel (%p262) target = $region28
        $region27: #{tpu_custom_call.1} parent=11 // pred_region
          _
        $region28: #{tpu_custom_call.1} parent=11 // pred_fallthru
          _
        // Predicated region
        $region29: #{tpu_custom_call.1} parent=11 // pred_check
          %p265 = pneg %p149
        $region30: #{tpu_custom_call.1} parent=11 // pred_check_branch
          %267 = sbr.rel (%p265) target = $region32
        $region31: #{tpu_custom_call.1} parent=11 // pred_region
          _
        $region32: #{tpu_custom_call.1} parent=11 // pred_fallthru
          _
        // Predicated region
        $region33: #{tpu_custom_call.1} parent=11 // pred_check
          %p268 = pneg %p170
        $region34: #{tpu_custom_call.1} parent=11 // pred_check_branch
          %270 = sbr.rel (%p268) target = $region36
        $region35: #{tpu_custom_call.1} parent=11 // pred_region
          _
        $region36: #{tpu_custom_call.1} parent=11 // pred_fallthru
          _
        // Predicated region
        $region37: #{tpu_custom_call.1} parent=11 // pred_check
          %p271 = pneg %p191
        $region38: #{tpu_custom_call.1} parent=11 // pred_check_branch
          %273 = sbr.rel (%p271) target = $region40
        $region39: #{tpu_custom_call.1} parent=11 // pred_region
          _
        $region40: #{tpu_custom_call.1} parent=11 // pred_fallthru
          _
        // Predicated region
        $region41: #{tpu_custom_call.1} parent=11 // pred_check
          %p274 = pneg %p212
        $region42: #{tpu_custom_call.1} parent=11 // pred_check_branch
          %276 = sbr.rel (%p274) target = $region44
        $region43: #{tpu_custom_call.1} parent=11 // pred_region
          _
        $region44: #{tpu_custom_call.1} parent=11 // pred_fallthru
          _
      $region12: #{tpu_custom_call.1} parent=5 // pred_fallthru
        _
      %p277 = scmp.lt.s32.totalorder %s18, 4
      // Predicated region
      $region45: #{tpu_custom_call.1} parent=5 // pred_check
        %p278 = pneg %p277
      $region46: #{tpu_custom_call.1} parent=5 // pred_check_branch
        %280 = sbr.rel (%p278) target = $region48
      $region47: #{tpu_custom_call.1} parent=5 // pred_region
        // Predicated region
        $region49: #{tpu_custom_call.1} parent=47 // pred_check
          %p281 = pneg %p38
        $region50: #{tpu_custom_call.1} parent=47 // pred_check_branch
          %283 = sbr.rel (%p281) target = $region52
        $region51: #{tpu_custom_call.1} parent=47 // pred_region
          %s284 = smul.u32 2, %s18
          %p285 = scmp.lt.s32.totalorder %s284, 7
          %s286 = scalar_select %p285, %s284, 7
          %s287 = smul.addr %s286, 2
          %s288 = scalar_lea.vmem %s0, %s287
          %s289 = smul.u32 2, %s18
        $region52: #{tpu_custom_call.1} parent=47 // pred_fallthru
          _
      $region48: #{tpu_custom_call.1} parent=5 // pred_fallthru
        _
      %p290 = scmp.le.s32.totalorder 1, %s18
      %p291 = scmp.lt.s32.totalorder %s18, 5
      %p292 = pnand %p290, %p291
      %p293 = pneg %p292
      // Predicated region
      $region53: #{tpu_custom_call.1} parent=5 // pred_check
        _
      $region54: #{tpu_custom_call.1} parent=5 // pred_check_branch
        %295 = sbr.rel (%p292) target = $region56
      $region55: #{tpu_custom_call.1} parent=5 // pred_region
        %s296 = ssub.s32 %s18, 1
        %s297 = smul.u32 2, %s23
        %p298 = scmp.lt.s32.totalorder %s297, 7
        %s299 = scalar_select %p298, %s297, 7
        %s300 = smul.addr %s299, 2
        %s301 = scalar_lea.vmem %s0, %s300
        %p302 = pneg %p44
        %p303 = pneg %p41
        %p304 = pneg %p65
        %p305 = pneg %p62
        %p306 = pneg %p86
        %p307 = pneg %p83
        %p308 = pneg %p107
        %p309 = pneg %p104
        %p310 = pneg %p128
        %p311 = pneg %p125
        %p312 = pneg %p149
        %p313 = pneg %p146
        %p314 = pneg %p170
        %p315 = pneg %p167
        %p316 = pneg %p191
        %p317 = pneg %p188
        %p318 = pneg %p212
        %p319 = pneg %p209
        %p320 = pneg %p238
        %p321 = pneg %p235
        %s322 = sand.u32 %s225, 1
        %s323 = scalar_lea.sflag [#allocation3], %s322
        %s324 = sand.u32 %s225, 1
        %s325 = smul.addr %s324, 16
        %s326 = scalar_lea.vmem [#allocation2], %s325
        %s327 = smul.u32 2, %s23
        %p328 = scmp.lt.s32.totalorder %s327, 7
        %s329 = scalar_select %p328, %s327, 7
        %s330 = smul.addr %s329, 2
        %s331 = scalar_lea.vmem %s0, %s330
        %s332 = smul.u32 2, %s23
        %s333 = smul.u32 2, %s23
        %v334 = vld [vmem:[%s331] sm:$0xf]
        %v335 = vld [vmem:[%s1] sm:$0xff]
        %v336 = vld [vmem:[%s1 + $0x8] sm:$0xff]
        %v337 = vld [vmem:[%s1 + $0x10] sm:$0xff]
        %v338 = vld [vmem:[%s1 + $0x18] sm:$0xff]
        %v339 = vld [vmem:[%s2] sm:$0xff]
        %v340 = vld [vmem:[%s2 + $0x8] sm:$0xff]
        %v341 = vld [vmem:[%s2 + $0x10] sm:$0xff]
        %v342 = vld [vmem:[%s2 + $0x18] sm:$0xff]
        %344 = vset.pattern.permute.xlu0 0
        %345 = vperm.xlu0 %344, %v339
        %v346 = vpop.permute.xlu0 %345
        %349 = vset.pattern.permute.xlu0 0
        %350 = vperm.xlu0 %349, %v340
        %v351 = vpop.permute.xlu0 %350
        %354 = vset.pattern.permute.xlu0 0
        %355 = vperm.xlu0 %354, %v341
        %v356 = vpop.permute.xlu0 %355
        %359 = vset.pattern.permute.xlu0 0
        %360 = vperm.xlu0 %359, %v342
        %v361 = vpop.permute.xlu0 %360
        %v365 = vunpack.c.l.s4 1983009808
        %v366 = vunpack.c.0.s8 %v365
        %v367 = vlaneseq
        %v368 = vshrl.u32 %v367, 7
        %v369 = vsub.s32 %v366, %v368
        %v370 = vrot.slane %v334, %v369
        %v371 = vcombine.high %v370, %v370
        %vm372 = vcmask 15360
        %v374 = vsel %vm372, %v335, 0
        %v377 = vsel %vm372, %v336, 0
        %v380 = vsel %vm372, %v337, 0
        %v383 = vsel %vm372, %v338, 0
        %vm385 = vcmask 1041408
        %v386 = vsel %vm385, %v370, 0
        %v388 = vsel %vm385, %v371, 0
        %390 = vmatprep.subr.mxu0 %v388
        %391 = vmatpush1.msra.mxu0 %v386
        %392 = vmatprep.subr.mxu0 0.0
        %393 = vmatpush1.msra.mxu0 0.0
        %394 = vmatprep.subr.mxu0 0.0
        %395 = vmatpush1.msra.mxu0 0.0
        %396 = vmatprep.subr.mxu0 0.0
        %397 = vmatpush1.msra.mxu0 0.0
        %398 = vmatprep.subr.mxu0 0.0
        %399 = vmatpush1.msra.mxu0 0.0
        %400 = vmatprep.subr.mxu0 0.0
        %401 = vmatpush1.msra.mxu0 0.0
        %402 = vmatprep.subr.mxu0 0.0
        %403 = vmatpush1.msra.mxu0 0.0
        %404 = vmatprep.subr.mxu0 0.0
        %405 = vmatpush1.msra.mxu0 0.0
        %406 = vmatprep.subr.mxu0 0.0
        %407 = vmatpush1.msra.mxu0 0.0
        %408 = vmatprep.subr.mxu0 0.0
        %409 = vmatpush1.msra.mxu0 0.0
        %410 = vmatprep.subr.mxu0 0.0
        %411 = vmatpush1.msra.mxu0 0.0
        %412 = vmatprep.subr.mxu0 0.0
        %413 = vmatpush1.msra.mxu0 0.0
        %414 = vmatprep.subr.mxu0 0.0
        %415 = vmatpush1.msra.mxu0 0.0
        %416 = vmatprep.subr.mxu0 0.0
        %417 = vmatpush1.msra.mxu0 0.0
        %418 = vmatprep.subr.mxu0 0.0
        %419 = vmatpush1.msra.mxu0 0.0
        %420 = vmatprep.subr.mxu0 0.0
        %421 = vmatpush1.msra.mxu0 0.0
        %422 = vmatprep.subr.mxu0 0.0
        %423 = vmatpush1.msra.mxu0 0.0
        %424 = vmatprep.subr.mxu0 0.0
        %425 = vmatpush1.msra.mxu0 0.0
        %426 = vmatprep.subr.mxu0 0.0
        %427 = vmatpush1.msra.mxu0 0.0
        %428 = vmatprep.subr.mxu0 0.0
        %429 = vmatpush1.msra.mxu0 0.0
        %430 = vmatprep.subr.mxu0 0.0
        %431 = vmatpush1.msra.mxu0 0.0
        %432 = vmatprep.subr.mxu0 0.0
        %433 = vmatpush1.msra.mxu0 0.0
        %434 = vmatprep.subr.mxu0 0.0
        %435 = vmatpush1.msra.mxu0 0.0
        %436 = vmatprep.subr.mxu0 0.0
        %437 = vmatpush1.msra.mxu0 0.0
        %438 = vmatprep.subr.mxu0 0.0
        %439 = vmatpush1.msra.mxu0 0.0
        %440 = vmatprep.subr.mxu0 0.0
        %441 = vmatpush1.msra.mxu0 0.0
        %442 = vmatprep.subr.mxu0 0.0
        %443 = vmatpush1.msra.mxu0 0.0
        %444 = vmatprep.subr.mxu0 0.0
        %445 = vmatpush1.msra.mxu0 0.0
        %446 = vmatprep.subr.mxu0 0.0
        %447 = vmatpush1.msra.mxu0 0.0
        %448 = vmatprep.subr.mxu0 0.0
        %449 = vmatpush1.msra.mxu0 0.0
        %450 = vmatprep.subr.mxu0 0.0
        %451 = vmatpush1.msra.mxu0 0.0
        %452 = vmatprep.subr.mxu0 0.0
        %453 = vmatpush1.msra.mxu0 0.0
        %454 = vmatprep.mubr.f32.mxu0 0.0
        %455 = vmatmul.mubr.f32.gmra.mrb[0].mxu0 %v374
        %v456 = vpop.f32.mrb[0].mxu0
        %v457 = vadd.f32 %v346, %v456
        %v458 = vpop.f32.mrb[0].mxu0
        %v459 = vadd.f32 %v346, %v458
        %460 = vmatprep.mubr.f32.mxu0 0.0
        %461 = vmatmul.mubr.f32.gmra.mrb[0].mxu0 %v377
        %v462 = vpop.f32.mrb[0].mxu0
        %v463 = vadd.f32 %v351, %v462
        %v464 = vpop.f32.mrb[0].mxu0
        %v465 = vadd.f32 %v351, %v464
        %466 = vmatprep.mubr.f32.mxu0 0.0
        %467 = vmatmul.mubr.f32.gmra.mrb[0].mxu0 %v380
        %v468 = vpop.f32.mrb[0].mxu0
        %v469 = vadd.f32 %v356, %v468
        %v470 = vpop.f32.mrb[0].mxu0
        %v471 = vadd.f32 %v356, %v470
        %472 = vmatprep.mubr.f32.mxu0 0.0
        %473 = vmatmul.mubr.f32.gmra.mrb[0].mxu0 %v383
        %v474 = vpop.f32.mrb[0].mxu0
        %v475 = vadd.f32 %v361, %v474
        %v476 = vpop.f32.mrb[0].mxu0
        %v477 = vadd.f32 %v361, %v476
        %478 = vdwg.mxu0
        %v479 = vtanh.pop %v457
        %v480 = vtanh.pop %v459
        %v481 = vtanh.pop %v463
        %v482 = vtanh.pop %v465
        %v483 = vtanh.pop %v469
        %v484 = vtanh.pop %v471
        %v485 = vtanh.pop %v475
        %v486 = vtanh.pop %v477
        %v487 = vld [vmem:[%s3] sm:$0xff]
        %v488 = vld [vmem:[%s3 + $0x8] sm:$0xff]
        %v489 = vld [vmem:[%s3 + $0x10] sm:$0xff]
        %v490 = vld [vmem:[%s3 + $0x18] sm:$0xff]
        %v491 = vld [vmem:[%s4] sm:$0xff]
        %v492 = vld [vmem:[%s4 + $0x8] sm:$0xff]
        %v493 = vld [vmem:[%s4 + $0x10] sm:$0xff]
        %v494 = vld [vmem:[%s4 + $0x18] sm:$0xff]
        %496 = vset.pattern.permute.xlu0 0
        %497 = vperm.xlu0 %496, %v491
        %v498 = vpop.permute.xlu0 %497
        %501 = vset.pattern.permute.xlu0 0
        %502 = vperm.xlu0 %501, %v492
        %v503 = vpop.permute.xlu0 %502
        %506 = vset.pattern.permute.xlu0 0
        %507 = vperm.xlu0 %506, %v493
        %v508 = vpop.permute.xlu0 %507
        %511 = vset.pattern.permute.xlu0 0
        %512 = vperm.xlu0 %511, %v494
        %v513 = vpop.permute.xlu0 %512
        %vm515 = vcmask 261120
        %v517 = vsel %vm515, %v487, 0
        %v520 = vsel %vm515, %v488, 0
        %v523 = vsel %vm515, %v489, 0
        %v526 = vsel %vm515, %v490, 0
        %528 = vmatprep.subr.mxu0 %v480
        %529 = vmatpush1.msra.mxu0 %v479
        %530 = vmatprep.subr.mxu0 %v482
        %531 = vmatpush1.msra.mxu0 %v481
        %532 = vmatprep.subr.mxu0 %v484
        %533 = vmatpush1.msra.mxu0 %v483
        %534 = vmatprep.subr.mxu0 %v486
        %535 = vmatpush1.msra.mxu0 %v485
        %536 = vmatprep.subr.mxu0 0.0
        %537 = vmatpush1.msra.mxu0 0.0
        %538 = vmatprep.subr.mxu0 0.0
        %539 = vmatpush1.msra.mxu0 0.0
        %540 = vmatprep.subr.mxu0 0.0
        %541 = vmatpush1.msra.mxu0 0.0
        %542 = vmatprep.subr.mxu0 0.0
        %543 = vmatpush1.msra.mxu0 0.0
        %544 = vmatprep.subr.mxu0 0.0
        %545 = vmatpush1.msra.mxu0 0.0
        %546 = vmatprep.subr.mxu0 0.0
        %547 = vmatpush1.msra.mxu0 0.0
        %548 = vmatprep.subr.mxu0 0.0
        %549 = vmatpush1.msra.mxu0 0.0
        %550 = vmatprep.subr.mxu0 0.0
        %551 = vmatpush1.msra.mxu0 0.0
        %552 = vmatprep.subr.mxu0 0.0
        %553 = vmatpush1.msra.mxu0 0.0
        %554 = vmatprep.subr.mxu0 0.0
        %555 = vmatpush1.msra.mxu0 0.0
        %556 = vmatprep.subr.mxu0 0.0
        %557 = vmatpush1.msra.mxu0 0.0
        %558 = vmatprep.subr.mxu0 0.0
        %559 = vmatpush1.msra.mxu0 0.0
        %560 = vmatprep.subr.mxu0 0.0
        %561 = vmatpush1.msra.mxu0 0.0
        %562 = vmatprep.subr.mxu0 0.0
        %563 = vmatpush1.msra.mxu0 0.0
        %564 = vmatprep.subr.mxu0 0.0
        %565 = vmatpush1.msra.mxu0 0.0
        %566 = vmatprep.subr.mxu0 0.0
        %567 = vmatpush1.msra.mxu0 0.0
        %568 = vmatprep.subr.mxu0 0.0
        %569 = vmatpush1.msra.mxu0 0.0
        %570 = vmatprep.subr.mxu0 0.0
        %571 = vmatpush1.msra.mxu0 0.0
        %572 = vmatprep.subr.mxu0 0.0
        %573 = vmatpush1.msra.mxu0 0.0
        %574 = vmatprep.subr.mxu0 0.0
        %575 = vmatpush1.msra.mxu0 0.0
        %576 = vmatprep.subr.mxu0 0.0
        %577 = vmatpush1.msra.mxu0 0.0
        %578 = vmatprep.subr.mxu0 0.0
        %579 = vmatpush1.msra.mxu0 0.0
        %580 = vmatprep.subr.mxu0 0.0
        %581 = vmatpush1.msra.mxu0 0.0
        %582 = vmatprep.subr.mxu0 0.0
        %583 = vmatpush1.msra.mxu0 0.0
        %584 = vmatprep.subr.mxu0 0.0
        %585 = vmatpush1.msra.mxu0 0.0
        %586 = vmatprep.subr.mxu0 0.0
        %587 = vmatpush1.msra.mxu0 0.0
        %588 = vmatprep.subr.mxu0 0.0
        %589 = vmatpush1.msra.mxu0 0.0
        %590 = vmatprep.subr.mxu0 0.0
        %591 = vmatpush1.msra.mxu0 0.0
        %592 = vmatprep.mubr.f32.mxu0 0.0
        %593 = vmatmul.mubr.f32.gmra.mrb[0].mxu0 %v517
        %v594 = vpop.f32.mrb[0].mxu0
        %v595 = vadd.f32 %v498, %v594
        %v596 = vpop.f32.mrb[0].mxu0
        %v597 = vadd.f32 %v498, %v596
        %598 = vmatprep.mubr.f32.mxu0 0.0
        %599 = vmatmul.mubr.f32.gmra.mrb[0].mxu0 %v520
        %v600 = vpop.f32.mrb[0].mxu0
        %v601 = vadd.f32 %v503, %v600
        %v602 = vpop.f32.mrb[0].mxu0
        %v603 = vadd.f32 %v503, %v602
        %604 = vmatprep.mubr.f32.mxu0 0.0
        %605 = vmatmul.mubr.f32.gmra.mrb[0].mxu0 %v523
        %v606 = vpop.f32.mrb[0].mxu0
        %v607 = vadd.f32 %v508, %v606
        %v608 = vpop.f32.mrb[0].mxu0
        %v609 = vadd.f32 %v508, %v608
        %610 = vmatprep.mubr.f32.mxu0 0.0
        %611 = vmatmul.mubr.f32.gmra.mrb[0].mxu0 %v526
        %v612 = vpop.f32.mrb[0].mxu0
        %v613 = vadd.f32 %v513, %v612
        %v614 = vpop.f32.mrb[0].mxu0
        %v615 = vadd.f32 %v513, %v614
        %616 = vdwg.mxu0
        %v617 = vtanh.pop %v595
        %v618 = vtanh.pop %v597
        %v619 = vtanh.pop %v601
        %v620 = vtanh.pop %v603
        %v621 = vtanh.pop %v607
        %v622 = vtanh.pop %v609
        %v623 = vtanh.pop %v613
        %v624 = vtanh.pop %v615
        %v625 = vld [vmem:[%s5] sm:$0xff]
        %v626 = vld [vmem:[%s5 + $0x8] sm:$0xff]
        %v627 = vld [vmem:[%s5 + $0x10] sm:$0xff]
        %v628 = vld [vmem:[%s5 + $0x18] sm:$0xff]
        %v629 = vld [vmem:[%s6] sm:$0xff]
        %v630 = vld [vmem:[%s6 + $0x8] sm:$0xff]
        %v631 = vld [vmem:[%s6 + $0x10] sm:$0xff]
        %v632 = vld [vmem:[%s6 + $0x18] sm:$0xff]
        %634 = vset.pattern.permute.xlu0 0
        %635 = vperm.xlu0 %634, %v629
        %v636 = vpop.permute.xlu0 %635
        %639 = vset.pattern.permute.xlu0 0
        %640 = vperm.xlu0 %639, %v630
        %v641 = vpop.permute.xlu0 %640
        %644 = vset.pattern.permute.xlu0 0
        %645 = vperm.xlu0 %644, %v631
        %v646 = vpop.permute.xlu0 %645
        %649 = vset.pattern.permute.xlu0 0
        %650 = vperm.xlu0 %649, %v632
        %v651 = vpop.permute.xlu0 %650
        %v654 = vsel %vm515, %v625, 0
        %v657 = vsel %vm515, %v626, 0
        %v660 = vsel %vm515, %v627, 0
        %v663 = vsel %vm515, %v628, 0
        %665 = vmatprep.subr.mxu0 %v618
        %666 = vmatpush1.msra.mxu0 %v617
        %667 = vmatprep.subr.mxu0 %v620
        %668 = vmatpush1.msra.mxu0 %v619
        %669 = vmatprep.subr.mxu0 %v622
        %670 = vmatpush1.msra.mxu0 %v621
        %671 = vmatprep.subr.mxu0 %v624
        %672 = vmatpush1.msra.mxu0 %v623
        %673 = vmatprep.subr.mxu0 0.0
        %674 = vmatpush1.msra.mxu0 0.0
        %675 = vmatprep.subr.mxu0 0.0
        %676 = vmatpush1.msra.mxu0 0.0
        %677 = vmatprep.subr.mxu0 0.0
        %678 = vmatpush1.msra.mxu0 0.0
        %679 = vmatprep.subr.mxu0 0.0
        %680 = vmatpush1.msra.mxu0 0.0
        %681 = vmatprep.subr.mxu0 0.0
        %682 = vmatpush1.msra.mxu0 0.0
        %683 = vmatprep.subr.mxu0 0.0
        %684 = vmatpush1.msra.mxu0 0.0
        %685 = vmatprep.subr.mxu0 0.0
        %686 = vmatpush1.msra.mxu0 0.0
        %687 = vmatprep.subr.mxu0 0.0
        %688 = vmatpush1.msra.mxu0 0.0
        %689 = vmatprep.subr.mxu0 0.0
        %690 = vmatpush1.msra.mxu0 0.0
        %691 = vmatprep.subr.mxu0 0.0
        %692 = vmatpush1.msra.mxu0 0.0
        %693 = vmatprep.subr.mxu0 0.0
        %694 = vmatpush1.msra.mxu0 0.0
        %695 = vmatprep.subr.mxu0 0.0
        %696 = vmatpush1.msra.mxu0 0.0
        %697 = vmatprep.subr.mxu0 0.0
        %698 = vmatpush1.msra.mxu0 0.0
        %699 = vmatprep.subr.mxu0 0.0
        %700 = vmatpush1.msra.mxu0 0.0
        %701 = vmatprep.subr.mxu0 0.0
        %702 = vmatpush1.msra.mxu0 0.0
        %703 = vmatprep.subr.mxu0 0.0
        %704 = vmatpush1.msra.mxu0 0.0
        %705 = vmatprep.subr.mxu0 0.0
        %706 = vmatpush1.msra.mxu0 0.0
        %707 = vmatprep.subr.mxu0 0.0
        %708 = vmatpush1.msra.mxu0 0.0
        %709 = vmatprep.subr.mxu0 0.0
        %710 = vmatpush1.msra.mxu0 0.0
        %711 = vmatprep.subr.mxu0 0.0
        %712 = vmatpush1.msra.mxu0 0.0
        %713 = vmatprep.subr.mxu0 0.0
        %714 = vmatpush1.msra.mxu0 0.0
        %715 = vmatprep.subr.mxu0 0.0
        %716 = vmatpush1.msra.mxu0 0.0
        %717 = vmatprep.subr.mxu0 0.0
        %718 = vmatpush1.msra.mxu0 0.0
        %719 = vmatprep.subr.mxu0 0.0
        %720 = vmatpush1.msra.mxu0 0.0
        %721 = vmatprep.subr.mxu0 0.0
        %722 = vmatpush1.msra.mxu0 0.0
        %723 = vmatprep.subr.mxu0 0.0
        %724 = vmatpush1.msra.mxu0 0.0
        %725 = vmatprep.subr.mxu0 0.0
        %726 = vmatpush1.msra.mxu0 0.0
        %727 = vmatprep.subr.mxu0 0.0
        %728 = vmatpush1.msra.mxu0 0.0
        %729 = vmatprep.mubr.f32.mxu0 0.0
        %730 = vmatmul.mubr.f32.gmra.mrb[0].mxu0 %v654
        %v731 = vpop.f32.mrb[0].mxu0
        %v732 = vadd.f32 %v636, %v731
        %v733 = vpop.f32.mrb[0].mxu0
        %v734 = vadd.f32 %v636, %v733
        %735 = vmatprep.mubr.f32.mxu0 0.0
        %736 = vmatmul.mubr.f32.gmra.mrb[0].mxu0 %v657
        %v737 = vpop.f32.mrb[0].mxu0
        %v738 = vadd.f32 %v641, %v737
        %v739 = vpop.f32.mrb[0].mxu0
        %v740 = vadd.f32 %v641, %v739
        %741 = vmatprep.mubr.f32.mxu0 0.0
        %742 = vmatmul.mubr.f32.gmra.mrb[0].mxu0 %v660
        %v743 = vpop.f32.mrb[0].mxu0
        %v744 = vadd.f32 %v646, %v743
        %v745 = vpop.f32.mrb[0].mxu0
        %v746 = vadd.f32 %v646, %v745
        %747 = vmatprep.mubr.f32.mxu0 0.0
        %748 = vmatmul.mubr.f32.gmra.mrb[0].mxu0 %v663
        %v749 = vpop.f32.mrb[0].mxu0
        %v750 = vadd.f32 %v651, %v749
        %v751 = vpop.f32.mrb[0].mxu0
        %v752 = vadd.f32 %v651, %v751
        %753 = vdwg.mxu0
        %v754 = vtanh.pop %v732
        %v755 = vtanh.pop %v734
        %v756 = vtanh.pop %v738
        %v757 = vtanh.pop %v740
        %v758 = vtanh.pop %v744
        %v759 = vtanh.pop %v746
        %v760 = vtanh.pop %v750
        %v761 = vtanh.pop %v752
        %v762 = vld [vmem:[%s7] sm:$0xff]
        %v763 = vld [vmem:[%s8] sm:$0xff]
        %765 = vset.pattern.permute.xlu0 0
        %766 = vperm.xlu0 %765, %v763
        %v767 = vpop.permute.xlu0 %766
        %v770 = vsel %vm515, %v762, 0
        %772 = vmatprep.subr.mxu0 %v755
        %773 = vmatpush1.msra.mxu0 %v754
        %774 = vmatprep.subr.mxu0 %v757
        %775 = vmatpush1.msra.mxu0 %v756
        %776 = vmatprep.subr.mxu0 %v759
        %777 = vmatpush1.msra.mxu0 %v758
        %778 = vmatprep.subr.mxu0 %v761
        %779 = vmatpush1.msra.mxu0 %v760
        %780 = vmatprep.subr.mxu0 0.0
        %781 = vmatpush1.msra.mxu0 0.0
        %782 = vmatprep.subr.mxu0 0.0
        %783 = vmatpush1.msra.mxu0 0.0
        %784 = vmatprep.subr.mxu0 0.0
        %785 = vmatpush1.msra.mxu0 0.0
        %786 = vmatprep.subr.mxu0 0.0
        %787 = vmatpush1.msra.mxu0 0.0
        %788 = vmatprep.subr.mxu0 0.0
        %789 = vmatpush1.msra.mxu0 0.0
        %790 = vmatprep.subr.mxu0 0.0
        %791 = vmatpush1.msra.mxu0 0.0
        %792 = vmatprep.subr.mxu0 0.0
        %793 = vmatpush1.msra.mxu0 0.0
        %794 = vmatprep.subr.mxu0 0.0
        %795 = vmatpush1.msra.mxu0 0.0
        %796 = vmatprep.subr.mxu0 0.0
        %797 = vmatpush1.msra.mxu0 0.0
        %798 = vmatprep.subr.mxu0 0.0
        %799 = vmatpush1.msra.mxu0 0.0
        %800 = vmatprep.subr.mxu0 0.0
        %801 = vmatpush1.msra.mxu0 0.0
        %802 = vmatprep.subr.mxu0 0.0
        %803 = vmatpush1.msra.mxu0 0.0
        %804 = vmatprep.subr.mxu0 0.0
        %805 = vmatpush1.msra.mxu0 0.0
        %806 = vmatprep.subr.mxu0 0.0
        %807 = vmatpush1.msra.mxu0 0.0
        %808 = vmatprep.subr.mxu0 0.0
        %809 = vmatpush1.msra.mxu0 0.0
        %810 = vmatprep.subr.mxu0 0.0
        %811 = vmatpush1.msra.mxu0 0.0
        %812 = vmatprep.subr.mxu0 0.0
        %813 = vmatpush1.msra.mxu0 0.0
        %814 = vmatprep.subr.mxu0 0.0
        %815 = vmatpush1.msra.mxu0 0.0
        %816 = vmatprep.subr.mxu0 0.0
        %817 = vmatpush1.msra.mxu0 0.0
        %818 = vmatprep.subr.mxu0 0.0
        %819 = vmatpush1.msra.mxu0 0.0
        %820 = vmatprep.subr.mxu0 0.0
        %821 = vmatpush1.msra.mxu0 0.0
        %822 = vmatprep.subr.mxu0 0.0
        %823 = vmatpush1.msra.mxu0 0.0
        %824 = vmatprep.subr.mxu0 0.0
        %825 = vmatpush1.msra.mxu0 0.0
        %826 = vmatprep.subr.mxu0 0.0
        %827 = vmatpush1.msra.mxu0 0.0
        %828 = vmatprep.subr.mxu0 0.0
        %829 = vmatpush1.msra.mxu0 0.0
        %830 = vmatprep.subr.mxu0 0.0
        %831 = vmatpush1.msra.mxu0 0.0
        %832 = vmatprep.subr.mxu0 0.0
        %833 = vmatpush1.msra.mxu0 0.0
        %834 = vmatprep.subr.mxu0 0.0
        %835 = vmatpush1.msra.mxu0 0.0
        %836 = vmatprep.mubr.f32.mxu0 0.0
        %837 = vmatmul.mubr.f32.gmra.mrb[0].mxu0 %v770
        %v838 = vpop.f32.mrb[0].mxu0
        %v839 = vadd.f32 %v767, %v838
        %v840 = vpop.f32.mrb[0].mxu0
        %v841 = vadd.f32 %v767, %v840
        %842 = vdwg.mxu0
        %843 = vst [vmem:[%s326] sm:$0xff] %v839
        %844 = vst [vmem:[%s326 + $0x8] sm:$0xff] %v841
        %s845 = sand.u32 %s225, 1
        %s846 = scalar_lea.sflag [#allocation3], %s845
        %s847 = sand.u32 %s225, 1
        %s848 = smul.addr %s847, 16
        %s849 = scalar_lea.vmem [#allocation2], %s848
        // Predicated region
        $region57: #{tpu_custom_call.1} parent=55 // pred_check
          %p850 = pneg %p235
        $region58: #{tpu_custom_call.1} parent=55 // pred_check_branch
          %852 = sbr.rel (%p850) target = $region60
        $region59: #{tpu_custom_call.1} parent=55 // pred_region
          %s853 = smul.u32 2, %s23
          %s855 = ssub.s32 256, 256
          %856 = vsyncadd %s846, %s855
          %s857 = smul.addr %s853, 128
          %s858 = scalar_lea.hbm %s9, %s857
          %s860 = sshll.u32 %s849, 4
          %s861 = int_to_ptr.vmem [resolvable:$true] %s860
          %863 = dma.vmem_to_hbm [thread:$0]  %s861, 256, %s858, %s846
        $region60: #{tpu_custom_call.1} parent=55 // pred_fallthru
          _
      $region56: #{tpu_custom_call.1} parent=5 // pred_fallthru
        _
      %p864 = scmp.le.s32.totalorder 2, %s18
      // Predicated region
      $region61: #{tpu_custom_call.1} parent=5 // pred_check
        %p865 = pneg %p864
      $region62: #{tpu_custom_call.1} parent=5 // pred_check_branch
        %867 = sbr.rel (%p865) target = $region64
      $region63: #{tpu_custom_call.1} parent=5 // pred_region
        %s868 = ssub.s32 %s18, 2
        // Predicated region
        $region65: #{tpu_custom_call.1} parent=63 // pred_check
          %p869 = pneg %p241
        $region66: #{tpu_custom_call.1} parent=63 // pred_check_branch
          %871 = sbr.rel (%p869) target = $region68
        $region67: #{tpu_custom_call.1} parent=63 // pred_region
          %s872 = sand.u32 %s226, 1
          %s873 = scalar_lea.sflag [#allocation3], %s872
          %s874 = sand.u32 %s226, 1
          %s875 = smul.addr %s874, 16
          %s876 = scalar_lea.vmem [#allocation2], %s875
          %877 = dma.done %s873, 256
        $region68: #{tpu_custom_call.1} parent=63 // pred_fallthru
          _
      $region64: #{tpu_custom_call.1} parent=5 // pred_fallthru
        _
    $region6: #{tpu_custom_call.1} parent=1 // loop_footer
      %s22 = sadd.s32 1, %s18
    $region7: #{tpu_custom_call.1} parent=1 // loop_footer_branch
      %17 = sbr.rel target = $region3
    $region8: #{tpu_custom_call.1} parent=1 // loop_exit
      _
    %878 = vsyncpa [#allocation3], 1
    %s879 = scalar_lea.sflag [#allocation3], 1
    %880 = vsyncpa %s879, 1

</llo_original>
